<compile_context>
chip_gen: v5e
topology: v5e:2x2
jax: 0.10.0
libtpu: 0.0.40
codegen_flags: <defaults>
</compile_context>

<pallas_src>
import functools
import math

import jax
import jax.numpy as jnp
from jax.experimental import pallas as pl
from jax.experimental.pallas import tpu as pltpu


def _round_up(x, m):
    return (x + m - 1) // m * m


def _choose_row_tile(OH, OW, B):
    """Output rows per grid step: th*OW lane-dense (%128==0), th divides OH,
    and enough total grid steps (>=4 when possible) for v7x megacore."""
    q = max(1, 128 // math.gcd(OW, 128))            # th must be a multiple of q
    cands = [t for t in range(q, OH + 1, q) if OH % t == 0] or [OH]
    for min_steps in (4, 2, 1):
        good = [t for t in cands if B * (OH // t) >= min_steps]
        if good:
            return max(good)
    return max(cands)


# ------------------------------- Pallas kernel --------------------------------
# xp_ref : (1, Hp, Wp, Cin) bf16   padded NHWC image of one batch (resident in
#                                  VMEM; re-DMA'd only when the batch changes)
# w_ref  : (kh*kw, Cin, Cout) bf16 conv weight, one (Cin, Cout) slab per tap
# ss_ref : (2, Cout) f32           row 0 = BN scale, row 1 = folded bias/shift
# o_ref  : (1, Cout, th*OW) f32    NCHW-flattened, lane-dense output tile
def _conv_bn_relu_kernel(xp_ref, w_ref, ss_ref, o_ref, *, kh, kw, cin, th, ow):
    r = pl.program_id(1)
    r0 = r * th
    if th % 8 == 0:
        r0 = pl.multiple_of(r0, 8)
    # Input rows needed for this tile of `th` output rows (stride 1): th+kh-1.
    xwin = xp_ref[0, pl.ds(r0, th + kh - 1), :, :]           # (th+kh-1, Wp, Cin)

    cout = o_ref.shape[1]
    acc = jnp.zeros((th * ow, cout), jnp.float32)
    for di in range(kh):                                      # kh*kw small matmuls,
        for dj in range(kw):                                  # f32 MXU accumulation
            a = xwin[di:di + th, dj:dj + ow, :].reshape(th * ow, cin)
            acc += jnp.dot(a, w_ref[di * kw + dj],
                           preferred_element_type=jnp.float32)

    scale = ss_ref[0:1, :]                                    # (1, Cout)
    shift = ss_ref[1:2, :]
    y = jnp.maximum(acc * scale + shift, 0.0)                 # BN + ReLU epilogue
    o_ref[0, :, :] = y.T                                      # (Cout, th*OW) dense store


# ------------------------------ module forward --------------------------------
def conv_bn_relu(x, weight, bias, gamma, beta, running_mean, running_var,
                 *, stride=1, padding=1, eps=1e-5):
    """single_conv_relu_batch.forward: Conv2d -> BatchNorm2d(eval) -> ReLU.

    x: (B, Cin, H, W) NCHW f32; weight: (Cout, Cin, kh, kw); returns NCHW f32.
    """
    B, Cin, H, W = x.shape
    Cout, Cin2, kh, kw = weight.shape
    assert Cin == Cin2
    # TODO(synk): stride > 1 would need strided tap slicing inside the kernel;
    # the module's default (and tested) configuration is stride=1.
    assert stride == 1, "fused kernel implements the module default stride=1"
    ph = pw = padding
    OH = H + 2 * ph - kh + 1
    OW = W + 2 * pw - kw + 1
    Hp, Wp = H + 2 * ph, W + 2 * pw

    # One NCHW->NHWC transpose + zero halo + bf16 cast (single fused XLA pass);
    # the kernel then reads the activation exactly once per batch image.
    xp = jnp.transpose(x, (0, 2, 3, 1)).astype(jnp.bfloat16)
    xp = jnp.pad(xp, ((0, 0), (ph, ph), (pw, pw), (0, 0)))

    # Weight -> (kh*kw, Cin, Cout) bf16, one (Cin, Cout) slab per tap.
    wmat = jnp.transpose(weight, (2, 3, 1, 0)).reshape(kh * kw, Cin, Cout)
    wmat = wmat.astype(jnp.bfloat16)

    # Fold conv bias + eval-mode BN into a single per-channel affine:
    #   y = conv * s + ((bias - mean) * s + beta),  s = gamma / sqrt(var + eps)
    scale = (gamma / jnp.sqrt(running_var + eps)).astype(jnp.float32)
    shift = ((bias - running_mean) * scale + beta).astype(jnp.float32)
    ss = jnp.stack([scale, shift], axis=0)                    # (2, Cout), one DMA

    th = _choose_row_tile(OH, OW, B)                          # th divides OH
    n_rt = OH // th

    # VMEM budget (tile-padded, double-buffered) -> explicit scoped limit.
    # TODO(synk): for very large Hp*Wp*Cin (whole padded image > VMEM), switch
    # the activation to pl.ANY + a manually DMA'd (th + kh - 1)-row halo window.
    xp_blk = Hp * _round_up(Wp, 16) * _round_up(Cin, 128) * 2
    w_blk = kh * kw * _round_up(Cin, 16) * _round_up(Cout, 128) * 2
    ss_blk = 8 * _round_up(Cout, 128) * 4
    out_blk = _round_up(Cout, 8) * _round_up(th * OW, 128) * 4
    slack = 4 * (th + kh - 1) * _round_up(Wp, 16) * _round_up(Cin, 128) * 2
    vmem_est = 2 * (xp_blk + w_blk + ss_blk + out_blk) + slack
    vmem_limit = int(min(56 * 2 ** 20, max(32 * 2 ** 20, 2 * vmem_est)))

    kernel = functools.partial(_conv_bn_relu_kernel,
                               kh=kh, kw=kw, cin=Cin, th=th, ow=OW)
    out = pl.pallas_call(
        kernel,
        out_shape=jax.ShapeDtypeStruct((B, Cout, OH * OW), jnp.float32),
        grid_spec=pltpu.PrefetchScalarGridSpec(
            num_scalar_prefetch=0,
            grid=(B, n_rt),
            in_specs=[
                # Full padded image of one batch; block index constant along the
                # row-tile axis -> fetched once per batch, resident across tiles.
                pl.BlockSpec((1, Hp, Wp, Cin), lambda b, r: (b, 0, 0, 0)),
                pl.BlockSpec((kh * kw, Cin, Cout), lambda b, r: (0, 0, 0)),
                pl.BlockSpec((2, Cout), lambda b, r: (0, 0)),
            ],
            out_specs=pl.BlockSpec((1, Cout, th * OW), lambda b, r: (b, 0, r)),
        ),
        compiler_params=pltpu.CompilerParams(
            dimension_semantics=("parallel", "parallel"),
            vmem_limit_bytes=vmem_limit),
    )(xp, wmat, ss)
    # Metadata-only reshape: the kernel already wrote NCHW-flattened data.
    return out.reshape(B, Cout, OH, OW)


@jax.jit
def forward(x, weight, bias, gamma, beta, running_mean, running_var):
    return conv_bn_relu(x, weight, bias, gamma, beta, running_mean, running_var,
                        stride=1, padding=1)


def _reference(x, weight, bias, gamma, beta, rm, rv, eps=1e-5):
    y = jax.lax.conv_general_dilated(
        x, weight, window_strides=(1, 1), padding=((1, 1), (1, 1)),
        dimension_numbers=("NCHW", "OIHW", "NCHW"))
    y = y + bias[None, :, None, None]
    y = ((y - rm[None, :, None, None]) /
         jnp.sqrt(rv[None, :, None, None] + eps) *
         gamma[None, :, None, None] + beta[None, :, None, None])
    return jnp.maximum(y, 0.0)


if __name__ == "__main__":
    key = jax.random.PRNGKey(0)
    k1, k2, k3, k4, k5 = jax.random.split(key, 5)
    in_ch, out_ch = 4, 8
    x = jax.random.normal(k1, (2, in_ch, 16, 16), jnp.float32)
    weight = jax.random.normal(k2, (out_ch, in_ch, 3, 3), jnp.float32) * 0.1
    bias = jax.random.normal(k3, (out_ch,), jnp.float32) * 0.1
    gamma = 1.0 + 0.05 * jax.random.normal(k4, (out_ch,), jnp.float32)
    beta = 0.05 * jax.random.normal(k5, (out_ch,), jnp.float32)
    running_mean = jnp.zeros((out_ch,), jnp.float32)
    running_var = jnp.ones((out_ch,), jnp.float32)

    out = forward(x, weight, bias, gamma, beta, running_mean, running_var)
    out = jax.block_until_ready(out)

    assert out.shape == (2, out_ch, 16, 16)
    assert bool(jnp.all(jnp.isfinite(out)))
    assert bool(jnp.all(out >= 0.0))                          # ReLU output

    ref = _reference(x, weight, bias, gamma, beta, running_mean, running_var)
    assert bool(jnp.allclose(out, ref, atol=5e-2, rtol=5e-2))  # bf16 tolerance

    print("KERNEL_OK")
</pallas_src>

<mosaic_0001>
module attributes {stable_mosaic.version = 11 : i64} {
  func.func @_conv_bn_relu_kernel(%arg0: i32, %arg1: i32, %arg2: memref<1x18x18x4xbf16, #tpu.memory_space<vmem>>, %arg3: memref<9x4x8xbf16, #tpu.memory_space<vmem>>, %arg4: memref<2x8xf32, #tpu.memory_space<vmem>>, %arg5: memref<1x8x128xf32, #tpu.memory_space<vmem>>) attributes {dimension_semantics = [#tpu.dimension_semantics<parallel>, #tpu.dimension_semantics<parallel>], iteration_bounds = array<i64: 2, 2>, scalar_prefetch = 0 : i64, scratch_operands = 0 : i64, tpu.core_type = #tpu.core_type<tc>, window_params = [{transform_indices = @transform_0, window_bounds = array<i64: 1, 18, 18, 4>}, {pipeline_mode = #tpu.pipeline_mode<synchronous>, transform_indices = @transform_1, window_bounds = array<i64: 9, 4, 8>}, {pipeline_mode = #tpu.pipeline_mode<synchronous>, transform_indices = @transform_2, window_bounds = array<i64: 2, 8>}, {transform_indices = @transform_3, window_bounds = array<i64: 1, 8, 128>}]} {
    %c8_i32 = arith.constant 8 : i32
    %0 = arith.muli %arg1, %c8_i32 : i32
    %1 = tpu.assume_multiple %0, 8 : i32
    %c0 = arith.constant 0 : index
    %2 = arith.index_cast %1 : i32 to index
    %c0_0 = arith.constant 0 : index
    %c0_1 = arith.constant 0 : index
    %3 = vector.load %arg2[%c0, %2, %c0_0, %c0_1] : memref<1x18x18x4xbf16, #tpu.memory_space<vmem>>, vector<1x10x18x4xbf16>
    %4 = vector.shape_cast %3 : vector<1x10x18x4xbf16> to vector<10x18x4xbf16>
    %cst = arith.constant 0.000000e+00 : f32
    %5 = vector.broadcast %cst : f32 to vector<128x8xf32>
    %6 = vector.extract_strided_slice %4 {offsets = [0, 0, 0], sizes = [8, 16, 4], strides = [1, 1, 1]} : vector<10x18x4xbf16> to vector<8x16x4xbf16>
    %7 = vector.shape_cast %6 : vector<8x16x4xbf16> to vector<128x4xbf16>
    %c0_2 = arith.constant 0 : index
    %c0_3 = arith.constant 0 : index
    %c0_4 = arith.constant 0 : index
    %8 = vector.load %arg3[%c0_2, %c0_3, %c0_4] : memref<9x4x8xbf16, #tpu.memory_space<vmem>>, vector<1x4x8xbf16>
    %9 = vector.shape_cast %8 : vector<1x4x8xbf16> to vector<4x8xbf16>
    %cst_5 = arith.constant dense<0.000000e+00> : vector<128x8xf32>
    %10 = tpu.matmul %7, %9, %cst_5 {dimension_numbers = #tpu.dot_dimension_numbers<[1], [0], [0], [1], [0, 0, 1, 1], [], []>} : vector<128x4xbf16>, vector<4x8xbf16>, vector<128x8xf32> -> vector<128x8xf32>
    %11 = arith.addf %5, %10 : vector<128x8xf32>
    %12 = vector.extract_strided_slice %4 {offsets = [0, 1, 0], sizes = [8, 16, 4], strides = [1, 1, 1]} : vector<10x18x4xbf16> to vector<8x16x4xbf16>
    %13 = vector.shape_cast %12 : vector<8x16x4xbf16> to vector<128x4xbf16>
    %c1 = arith.constant 1 : index
    %c0_6 = arith.constant 0 : index
    %c0_7 = arith.constant 0 : index
    %14 = vector.load %arg3[%c1, %c0_6, %c0_7] : memref<9x4x8xbf16, #tpu.memory_space<vmem>>, vector<1x4x8xbf16>
    %15 = vector.shape_cast %14 : vector<1x4x8xbf16> to vector<4x8xbf16>
    %cst_8 = arith.constant dense<0.000000e+00> : vector<128x8xf32>
    %16 = tpu.matmul %13, %15, %cst_8 {dimension_numbers = #tpu.dot_dimension_numbers<[1], [0], [0], [1], [0, 0, 1, 1], [], []>} : vector<128x4xbf16>, vector<4x8xbf16>, vector<128x8xf32> -> vector<128x8xf32>
    %17 = arith.addf %11, %16 : vector<128x8xf32>
    %18 = vector.extract_strided_slice %4 {offsets = [0, 2, 0], sizes = [8, 16, 4], strides = [1, 1, 1]} : vector<10x18x4xbf16> to vector<8x16x4xbf16>
    %19 = vector.shape_cast %18 : vector<8x16x4xbf16> to vector<128x4xbf16>
    %c2 = arith.constant 2 : index
    %c0_9 = arith.constant 0 : index
    %c0_10 = arith.constant 0 : index
    %20 = vector.load %arg3[%c2, %c0_9, %c0_10] : memref<9x4x8xbf16, #tpu.memory_space<vmem>>, vector<1x4x8xbf16>
    %21 = vector.shape_cast %20 : vector<1x4x8xbf16> to vector<4x8xbf16>
    %cst_11 = arith.constant dense<0.000000e+00> : vector<128x8xf32>
    %22 = tpu.matmul %19, %21, %cst_11 {dimension_numbers = #tpu.dot_dimension_numbers<[1], [0], [0], [1], [0, 0, 1, 1], [], []>} : vector<128x4xbf16>, vector<4x8xbf16>, vector<128x8xf32> -> vector<128x8xf32>
    %23 = arith.addf %17, %22 : vector<128x8xf32>
    %24 = vector.extract_strided_slice %4 {offsets = [1, 0, 0], sizes = [8, 16, 4], strides = [1, 1, 1]} : vector<10x18x4xbf16> to vector<8x16x4xbf16>
    %25 = vector.shape_cast %24 : vector<8x16x4xbf16> to vector<128x4xbf16>
    %c3 = arith.constant 3 : index
    %c0_12 = arith.constant 0 : index
    %c0_13 = arith.constant 0 : index
    %26 = vector.load %arg3[%c3, %c0_12, %c0_13] : memref<9x4x8xbf16, #tpu.memory_space<vmem>>, vector<1x4x8xbf16>
    %27 = vector.shape_cast %26 : vector<1x4x8xbf16> to vector<4x8xbf16>
    %cst_14 = arith.constant dense<0.000000e+00> : vector<128x8xf32>
    %28 = tpu.matmul %25, %27, %cst_14 {dimension_numbers = #tpu.dot_dimension_numbers<[1], [0], [0], [1], [0, 0, 1, 1], [], []>} : vector<128x4xbf16>, vector<4x8xbf16>, vector<128x8xf32> -> vector<128x8xf32>
    %29 = arith.addf %23, %28 : vector<128x8xf32>
    %30 = vector.extract_strided_slice %4 {offsets = [1, 1, 0], sizes = [8, 16, 4], strides = [1, 1, 1]} : vector<10x18x4xbf16> to vector<8x16x4xbf16>
    %31 = vector.shape_cast %30 : vector<8x16x4xbf16> to vector<128x4xbf16>
    %c4 = arith.constant 4 : index
    %c0_15 = arith.constant 0 : index
    %c0_16 = arith.constant 0 : index
    %32 = vector.load %arg3[%c4, %c0_15, %c0_16] : memref<9x4x8xbf16, #tpu.memory_space<vmem>>, vector<1x4x8xbf16>
    %33 = vector.shape_cast %32 : vector<1x4x8xbf16> to vector<4x8xbf16>
    %cst_17 = arith.constant dense<0.000000e+00> : vector<128x8xf32>
    %34 = tpu.matmul %31, %33, %cst_17 {dimension_numbers = #tpu.dot_dimension_numbers<[1], [0], [0], [1], [0, 0, 1, 1], [], []>} : vector<128x4xbf16>, vector<4x8xbf16>, vector<128x8xf32> -> vector<128x8xf32>
    %35 = arith.addf %29, %34 : vector<128x8xf32>
    %36 = vector.extract_strided_slice %4 {offsets = [1, 2, 0], sizes = [8, 16, 4], strides = [1, 1, 1]} : vector<10x18x4xbf16> to vector<8x16x4xbf16>
    %37 = vector.shape_cast %36 : vector<8x16x4xbf16> to vector<128x4xbf16>
    %c5 = arith.constant 5 : index
    %c0_18 = arith.constant 0 : index
    %c0_19 = arith.constant 0 : index
    %38 = vector.load %arg3[%c5, %c0_18, %c0_19] : memref<9x4x8xbf16, #tpu.memory_space<vmem>>, vector<1x4x8xbf16>
    %39 = vector.shape_cast %38 : vector<1x4x8xbf16> to vector<4x8xbf16>
    %cst_20 = arith.constant dense<0.000000e+00> : vector<128x8xf32>
    %40 = tpu.matmul %37, %39, %cst_20 {dimension_numbers = #tpu.dot_dimension_numbers<[1], [0], [0], [1], [0, 0, 1, 1], [], []>} : vector<128x4xbf16>, vector<4x8xbf16>, vector<128x8xf32> -> vector<128x8xf32>
    %41 = arith.addf %35, %40 : vector<128x8xf32>
    %42 = vector.extract_strided_slice %4 {offsets = [2, 0, 0], sizes = [8, 16, 4], strides = [1, 1, 1]} : vector<10x18x4xbf16> to vector<8x16x4xbf16>
    %43 = vector.shape_cast %42 : vector<8x16x4xbf16> to vector<128x4xbf16>
    %c6 = arith.constant 6 : index
    %c0_21 = arith.constant 0 : index
    %c0_22 = arith.constant 0 : index
    %44 = vector.load %arg3[%c6, %c0_21, %c0_22] : memref<9x4x8xbf16, #tpu.memory_space<vmem>>, vector<1x4x8xbf16>
    %45 = vector.shape_cast %44 : vector<1x4x8xbf16> to vector<4x8xbf16>
    %cst_23 = arith.constant dense<0.000000e+00> : vector<128x8xf32>
    %46 = tpu.matmul %43, %45, %cst_23 {dimension_numbers = #tpu.dot_dimension_numbers<[1], [0], [0], [1], [0, 0, 1, 1], [], []>} : vector<128x4xbf16>, vector<4x8xbf16>, vector<128x8xf32> -> vector<128x8xf32>
    %47 = arith.addf %41, %46 : vector<128x8xf32>
    %48 = vector.extract_strided_slice %4 {offsets = [2, 1, 0], sizes = [8, 16, 4], strides = [1, 1, 1]} : vector<10x18x4xbf16> to vector<8x16x4xbf16>
    %49 = vector.shape_cast %48 : vector<8x16x4xbf16> to vector<128x4xbf16>
    %c7 = arith.constant 7 : index
    %c0_24 = arith.constant 0 : index
    %c0_25 = arith.constant 0 : index
    %50 = vector.load %arg3[%c7, %c0_24, %c0_25] : memref<9x4x8xbf16, #tpu.memory_space<vmem>>, vector<1x4x8xbf16>
    %51 = vector.shape_cast %50 : vector<1x4x8xbf16> to vector<4x8xbf16>
    %cst_26 = arith.constant dense<0.000000e+00> : vector<128x8xf32>
    %52 = tpu.matmul %49, %51, %cst_26 {dimension_numbers = #tpu.dot_dimension_numbers<[1], [0], [0], [1], [0, 0, 1, 1], [], []>} : vector<128x4xbf16>, vector<4x8xbf16>, vector<128x8xf32> -> vector<128x8xf32>
    %53 = arith.addf %47, %52 : vector<128x8xf32>
    %54 = vector.extract_strided_slice %4 {offsets = [2, 2, 0], sizes = [8, 16, 4], strides = [1, 1, 1]} : vector<10x18x4xbf16> to vector<8x16x4xbf16>
    %55 = vector.shape_cast %54 : vector<8x16x4xbf16> to vector<128x4xbf16>
    %c8 = arith.constant 8 : index
    %c0_27 = arith.constant 0 : index
    %c0_28 = arith.constant 0 : index
    %56 = vector.load %arg3[%c8, %c0_27, %c0_28] : memref<9x4x8xbf16, #tpu.memory_space<vmem>>, vector<1x4x8xbf16>
    %57 = vector.shape_cast %56 : vector<1x4x8xbf16> to vector<4x8xbf16>
    %cst_29 = arith.constant dense<0.000000e+00> : vector<128x8xf32>
    %58 = tpu.matmul %55, %57, %cst_29 {dimension_numbers = #tpu.dot_dimension_numbers<[1], [0], [0], [1], [0, 0, 1, 1], [], []>} : vector<128x4xbf16>, vector<4x8xbf16>, vector<128x8xf32> -> vector<128x8xf32>
    %59 = arith.addf %53, %58 : vector<128x8xf32>
    %c0_30 = arith.constant 0 : index
    %c0_31 = arith.constant 0 : index
    %60 = vector.load %arg4[%c0_30, %c0_31] : memref<2x8xf32, #tpu.memory_space<vmem>>, vector<1x8xf32>
    %c1_32 = arith.constant 1 : index
    %c0_33 = arith.constant 0 : index
    %61 = vector.load %arg4[%c1_32, %c0_33] : memref<2x8xf32, #tpu.memory_space<vmem>>, vector<1x8xf32>
    %62 = vector.broadcast %60 : vector<1x8xf32> to vector<128x8xf32>
    %63 = arith.mulf %59, %62 : vector<128x8xf32>
    %64 = vector.broadcast %61 : vector<1x8xf32> to vector<128x8xf32>
    %65 = arith.addf %63, %64 : vector<128x8xf32>
    %cst_34 = arith.constant 0.000000e+00 : f32
    %66 = vector.broadcast %cst_34 : f32 to vector<128x8xf32>
    %67 = arith.maximumf %65, %66 : vector<128x8xf32>
    %68 = tpu.transpose %67, [1, 0] : vector<128x8xf32> -> vector<8x128xf32>
    %c0_35 = arith.constant 0 : index
    %c0_36 = arith.constant 0 : index
    %c0_37 = arith.constant 0 : index
    %69 = vector.load %arg5[%c0_35, %c0_36, %c0_37] : memref<1x8x128xf32, #tpu.memory_space<vmem>>, vector<1x8x128xf32>
    %70 = vector.shape_cast %69 : vector<1x8x128xf32> to vector<8x128xf32>
    %71 = vector.shape_cast %68 : vector<8x128xf32> to vector<1x8x128xf32>
    tpu.vector_store %arg5[%c0_35, %c0_36, %c0_37], %71 {strides = array<i32>} : memref<1x8x128xf32, #tpu.memory_space<vmem>>, vector<1x8x128xf32>,
    return
  }
  func.func @transform_0(%arg0: i32, %arg1: i32) -> (i32, i32, i32, i32) {
    %c0_i32 = arith.constant 0 : i32
    %c0_i32_0 = arith.constant 0 : i32
    %c0_i32_1 = arith.constant 0 : i32
    %c0_i32_2 = arith.constant 0 : i32
    return %arg0, %c0_i32, %c0_i32_0, %c0_i32_1 : i32, i32, i32, i32
  }
  func.func @transform_1(%arg0: i32, %arg1: i32) -> (i32, i32, i32) {
    %c0_i32 = arith.constant 0 : i32
    %c0_i32_0 = arith.constant 0 : i32
    %c0_i32_1 = arith.constant 0 : i32
    %c0_i32_2 = arith.constant 0 : i32
    return %c0_i32, %c0_i32_0, %c0_i32_1 : i32, i32, i32
  }
  func.func @transform_2(%arg0: i32, %arg1: i32) -> (i32, i32) {
    %c0_i32 = arith.constant 0 : i32
    %c0_i32_0 = arith.constant 0 : i32
    %c0_i32_1 = arith.constant 0 : i32
    return %c0_i32, %c0_i32_0 : i32, i32
  }
  func.func @transform_3(%arg0: i32, %arg1: i32) -> (i32, i32, i32) {
    %c0_i32 = arith.constant 0 : i32
    %c0_i32_0 = arith.constant 0 : i32
    return %arg0, %c0_i32, %arg1 : i32, i32, i32
  }
}

</mosaic_0001>

<llo_original>
// kernel: forward.1
$region0: #{forward.1}
  #allocation0 [shape = 'u32[]', space=smem, size = 0x4, offset = 0x4, fixed_abs, tag = 'smem constant byte address 0x4 - core index']
  #allocation1 [shape = 'u32[72,128]{1,0:T(1,128)}', space=vmem, size = 0x9000, scoped, tag = 'internal scratch']
  %s0 = inlined_call_operand.vmem [shape: bf16[2,18,18,4], index: 0, kind: input, shape index: {}]
  %s1 = inlined_call_operand.vmem [shape: bf16[9,4,8], index: 1, kind: input, shape index: {}]
  %s2 = inlined_call_operand.vmem [shape: f32[2,8], index: 2, kind: input, shape index: {}]
  %s3 = inlined_call_operand.vmem [shape: f32[2,8,256], index: 3, kind: output, shape index: {}]
  %s4 = sld [smem:[#allocation0]]
  $region45: #{forward.1} parent=0
    _
  %s6 = ssub.s32 1, %s4
  %s7 = scalar_select 0, %s6, %s4
  loop: start=0, step=1, limit=6
  $region2: #{forward.1} parent=0 // loop_pre_header
    _
  $region3: #{forward.1} parent=0 // loop_header
    %s9 = sphi 0, %s13
    %p10 = scmp.ge.s32.totalorder %s9, 6
    %s16 = sphi 0, %s28
    %s17 = sphi 0, %s24
    %s18 = sphi 0, %s16
    %s19 = sphi 0, %s17
    %s20 = sphi 0, %s18
    %s21 = sphi 0, %s19
    %s31 = sphi 0, %s33
    %s34 = sphi 0, %s31
    %s35 = sphi 0, %s34
    %s51 = sphi 0, %s35
    %s55 = sphi 0, %s55
    %s57 = sphi 0, %s55
    %s58 = sphi 0, %s57
    %s72 = sphi 0, %s58
    %s76 = sphi 0, %s76
    %s78 = sphi 0, %s76
    %s79 = sphi 0, %s78
    %s93 = sphi 0, %s79
    %s101 = sphi 0, %s103
    %s104 = sphi 0, %s101
    %s105 = sphi 0, %s104
    %s121 = sphi 0, %s105
  $region4: #{forward.1} parent=0 // loop_header_branch
    %12 = sbr.rel (%p10) target = $region8
  $region5: #{forward.1} parent=0 // loop_body
    %s14 = ssub.s32 %s9, 1
    %s15 = ssub.s32 %s9, 2
    %s22 = sadd.s32 1, %s17
    %p23 = scmp.ge.s32.totalorder %s22, 2
    %s24 = scalar_select %p23, 0, %s22
    %s25 = sadd.s32 1, %s16
    %s26 = scalar_select %p23, %s25, %s16
    %p27 = scmp.ge.s32.totalorder %s26, 2
    %s28 = scalar_select %p27, 0, %s26
    %s29 = ssub.s32 %s16, %s28
    %p30 = scmp.eq.s32.totalorder %s29, 0
    %s32 = sadd.s32 %s31, 1
    %s33 = scalar_select %p30, %s31, %s32
    %p36 = pneg %p30
    %p37 = scmp.eq.s32.totalorder %s9, 3
    %p38 = por %p36, %p37
    %p39 = scmp.ne.s32.totalorder %s31, %s34
    %p40 = scmp.eq.s32.totalorder %s9, 0
    %p41 = por %p39, %p40
    %p42 = scmp.ne.s32.totalorder %s31, %s34
    %p43 = scmp.eq.s32.totalorder %s14, 3
    %p44 = por %p42, %p43
    %p45 = scmp.ne.s32.totalorder %s34, %s35
    %p46 = scmp.eq.s32.totalorder %s14, 0
    %p47 = por %p45, %p46
    %p48 = scmp.ne.s32.totalorder %s34, %s35
    %p49 = scmp.eq.s32.totalorder %s15, 3
    %p50 = por %p48, %p49
    %p52 = scmp.ne.s32.totalorder %s35, %s51
    %p53 = scmp.eq.s32.totalorder %s15, 0
    %p54 = por %p52, %p53
    %s56 = sadd.s32 %s55, 1
    %p59 = scmp.eq.s32.totalorder %s9, 3
    %p60 = scmp.ne.s32.totalorder %s55, %s57
    %p61 = scmp.eq.s32.totalorder %s9, 0
    %p62 = por %p60, %p61
    %p63 = scmp.ne.s32.totalorder %s55, %s57
    %p64 = scmp.eq.s32.totalorder %s14, 3
    %p65 = por %p63, %p64
    %p66 = scmp.ne.s32.totalorder %s57, %s58
    %p67 = scmp.eq.s32.totalorder %s14, 0
    %p68 = por %p66, %p67
    %p69 = scmp.ne.s32.totalorder %s57, %s58
    %p70 = scmp.eq.s32.totalorder %s15, 3
    %p71 = por %p69, %p70
    %p73 = scmp.ne.s32.totalorder %s58, %s72
    %p74 = scmp.eq.s32.totalorder %s15, 0
    %p75 = por %p73, %p74
    %s77 = sadd.s32 %s76, 1
    %p80 = scmp.eq.s32.totalorder %s9, 3
    %p81 = scmp.ne.s32.totalorder %s76, %s78
    %p82 = scmp.eq.s32.totalorder %s9, 0
    %p83 = por %p81, %p82
    %p84 = scmp.ne.s32.totalorder %s76, %s78
    %p85 = scmp.eq.s32.totalorder %s14, 3
    %p86 = por %p84, %p85
    %p87 = scmp.ne.s32.totalorder %s78, %s79
    %p88 = scmp.eq.s32.totalorder %s14, 0
    %p89 = por %p87, %p88
    %p90 = scmp.ne.s32.totalorder %s78, %s79
    %p91 = scmp.eq.s32.totalorder %s15, 3
    %p92 = por %p90, %p91
    %p94 = scmp.ne.s32.totalorder %s79, %s93
    %p95 = scmp.eq.s32.totalorder %s15, 0
    %p96 = por %p94, %p95
    %s97 = ssub.s32 %s16, %s28
    %s98 = ssub.s32 %s17, %s24
    %s99 = sor.u32 %s97, %s98
    %p100 = scmp.eq.s32.totalorder %s99, 0
    %s102 = sadd.s32 %s101, 1
    %s103 = scalar_select %p100, %s101, %s102
    %p106 = pneg %p100
    %p107 = scmp.eq.s32.totalorder %s9, 3
    %p108 = por %p106, %p107
    %p109 = scmp.ne.s32.totalorder %s101, %s104
    %p110 = scmp.eq.s32.totalorder %s9, 0
    %p111 = por %p109, %p110
    %p112 = scmp.ne.s32.totalorder %s101, %s104
    %p113 = scmp.eq.s32.totalorder %s14, 3
    %p114 = por %p112, %p113
    %p115 = scmp.ne.s32.totalorder %s104, %s105
    %p116 = scmp.eq.s32.totalorder %s14, 0
    %p117 = por %p115, %p116
    %p118 = scmp.ne.s32.totalorder %s104, %s105
    %p119 = scmp.eq.s32.totalorder %s15, 3
    %p120 = por %p118, %p119
    %p122 = scmp.ne.s32.totalorder %s105, %s121
    %p123 = scmp.eq.s32.totalorder %s15, 0
    %p124 = por %p122, %p123
    %p125 = scmp.le.s32.totalorder 1, %s9
    %p126 = scmp.lt.s32.totalorder %s9, 5
    %p127 = pnand %p125, %p126
    %p128 = pneg %p127
    // Predicated region
    $region9: #{forward.1} parent=5 // pred_check
      _
    $region10: #{forward.1} parent=5 // pred_check_branch
      %130 = sbr.rel (%p127) target = $region12
    $region11: #{forward.1} parent=5 // pred_region
      %s131 = ssub.s32 %s9, 1
      // Predicated region
      $region13: #{forward.1} parent=11 // pred_check
        %p132 = pneg %p68
      $region14: #{forward.1} parent=11 // pred_check_branch
        %134 = sbr.rel (%p132) target = $region16
      $region15: #{forward.1} parent=11 // pred_region
        _
      $region16: #{forward.1} parent=11 // pred_fallthru
        _
      // Predicated region
      $region17: #{forward.1} parent=11 // pred_check
        %p135 = pneg %p89
      $region18: #{forward.1} parent=11 // pred_check_branch
        %137 = sbr.rel (%p135) target = $region20
      $region19: #{forward.1} parent=11 // pred_region
        _
      $region20: #{forward.1} parent=11 // pred_fallthru
        _
    $region12: #{forward.1} parent=5 // pred_fallthru
      _
    %p138 = scmp.lt.s32.totalorder %s9, 4
    // Predicated region
    $region21: #{forward.1} parent=5 // pred_check
      %p139 = pneg %p138
    $region22: #{forward.1} parent=5 // pred_check_branch
      %141 = sbr.rel (%p139) target = $region24
    $region23: #{forward.1} parent=5 // pred_region
      // Predicated region
      $region25: #{forward.1} parent=23 // pred_check
        %p142 = pneg %p41
      $region26: #{forward.1} parent=23 // pred_check_branch
        %144 = sbr.rel (%p142) target = $region28
      $region27: #{forward.1} parent=23 // pred_region
        %p145 = scmp.lt.s32.totalorder %s16, 1
        %s146 = scalar_select %p145, %s16, 1
        %s147 = smul.addr %s146, 54
        %s148 = smul.addr %s147, 4
        %s149 = scalar_lea.vmem %s0, %s148
      $region28: #{forward.1} parent=23 // pred_fallthru
        _
    $region24: #{forward.1} parent=5 // pred_fallthru
      _
    %p150 = scmp.le.s32.totalorder 1, %s9
    %p151 = scmp.lt.s32.totalorder %s9, 5
    %p152 = pnand %p150, %p151
    %p153 = pneg %p152
    // Predicated region
    $region29: #{forward.1} parent=5 // pred_check
      _
    $region30: #{forward.1} parent=5 // pred_check_branch
      %155 = sbr.rel (%p152) target = $region32
    $region31: #{forward.1} parent=5 // pred_region
      %s156 = ssub.s32 %s9, 1
      %p157 = scmp.lt.s32.totalorder %s18, 1
      %s158 = scalar_select %p157, %s18, 1
      %s159 = smul.addr %s158, 54
      %s160 = smul.addr %s159, 4
      %s161 = scalar_lea.vmem %s0, %s160
      %p162 = pneg %p47
      %p163 = pneg %p44
      %p164 = pneg %p68
      %p165 = pneg %p65
      %p166 = pneg %p89
      %p167 = pneg %p86
      %p168 = pneg %p117
      %p169 = pneg %p114
      %p170 = scmp.lt.s32.totalorder %s18, 1
      %s171 = scalar_select %p170, %s18, 1
      %p172 = scmp.lt.s32.totalorder %s19, 1
      %s173 = scalar_select %p172, %s19, 1
      %s174 = smul.addr %s171, 2
      %s175 = sadd.s32 %s173, %s174
      %s176 = smul.addr %s175, 8
      %s177 = scalar_lea.vmem %s3, %s176
      %p178 = scmp.lt.s32.totalorder %s18, 1
      %s179 = scalar_select %p178, %s18, 1
      %s180 = smul.addr %s179, 54
      %s181 = smul.addr %s180, 4
      %s182 = scalar_lea.vmem %s0, %s181
      %p183 = scmp.lt.s32.totalorder %s18, 1
      %s184 = scalar_select %p183, %s18, 1
      %p185 = scmp.lt.s32.totalorder %s19, 1
      %s186 = scalar_select %p185, %s19, 1
      %s187 = smul.addr %s184, 2
      %s188 = sadd.s32 %s186, %s187
      %s189 = smul.addr %s188, 8
      %s190 = scalar_lea.vmem %s3, %s189
      %s192 = smul.u32 %s19, 8
      %s193 = smul.u32 %s192, 3
      %s194 = smul.addr %s193, 4
      %s195 = scalar_lea.vmem %s182, %s194
      %v196 = vld [vmem:[%s195] sm:$0xf]
      %v197 = vld [vmem:[%s195 + $0x4] sm:$0xf]
      %v198 = vld [vmem:[%s195 + $0x8] sm:$0x1]
      %v199 = vld [vmem:[%s195 + $0xc] sm:$0xf]
      %v200 = vld [vmem:[%s195 + $0x10] sm:$0xf]
      %v201 = vld [vmem:[%s195 + $0x14] sm:$0x1]
      %v202 = vld [vmem:[%s195 + $0x18] sm:$0xf]
      %v203 = vld [vmem:[%s195 + $0x1c] sm:$0xf]
      %v204 = vld [vmem:[%s195 + $0x20] sm:$0x1]
      %v205 = vld [vmem:[%s195 + $0x24] sm:$0xf]
      %v206 = vld [vmem:[%s195 + $0x28] sm:$0xf]
      %v207 = vld [vmem:[%s195 + $0x2c] sm:$0x1]
      %v208 = vld [vmem:[%s195 + $0x30] sm:$0xf]
      %v209 = vld [vmem:[%s195 + $0x34] sm:$0xf]
      %v210 = vld [vmem:[%s195 + $0x38] sm:$0x1]
      %v211 = vld [vmem:[%s195 + $0x3c] sm:$0xf]
      %v212 = vld [vmem:[%s195 + $0x40] sm:$0xf]
      %v213 = vld [vmem:[%s195 + $0x44] sm:$0x1]
      %v214 = vld [vmem:[%s195 + $0x48] sm:$0xf]
      %v215 = vld [vmem:[%s195 + $0x4c] sm:$0xf]
      %v216 = vld [vmem:[%s195 + $0x50] sm:$0x1]
      %v217 = vld [vmem:[%s195 + $0x54] sm:$0xf]
      %v218 = vld [vmem:[%s195 + $0x58] sm:$0xf]
      %v219 = vld [vmem:[%s195 + $0x5c] sm:$0x1]
      %v220 = vld [vmem:[%s195 + $0x60] sm:$0xf]
      %v221 = vld [vmem:[%s195 + $0x64] sm:$0xf]
      %v222 = vld [vmem:[%s195 + $0x68] sm:$0x1]
      %v223 = vld [vmem:[%s195 + $0x6c] sm:$0xf]
      %v224 = vld [vmem:[%s195 + $0x70] sm:$0xf]
      %v225 = vld [vmem:[%s195 + $0x74] sm:$0x1]
      %v226 = vld [vmem:[%s1] sm:$0x3]
      %vm227 = vsmask.f32 3328
      %vm228 = vsmask.f32 7440
      %vm229 = vmor %vm227, %vm228
      %v231 = vshrl.u32 %v196, 16
      %v233 = vrot.slane %v231, 4
      %v234 = vshll.u32 %v196, 16
      %v236 = vrot.slane %v234, 5
      %v237 = vor.u32 %v233, %v236
      %v238 = vrot.slane %v237, 4
      %v240 = vshll.u32 %v197, 16
      %v242 = vrot.slane %v240, 5
      %v243 = vsel %vm229, %v238, %v242
      %v244 = vshrl.u32 %v197, 16
      %v246 = vrot.slane %v244, 4
      %v247 = vor.u32 %v246, %v242
      %v248 = vrot.slane %v247, 4
      %v250 = vshll.u32 %v198, 16
      %v252 = vrot.slane %v250, 5
      %v253 = vsel %vm229, %v248, %v252
      %v255 = vshrl.u32 %v199, 16
      %v257 = vrot.slane %v255, 4
      %v258 = vshll.u32 %v199, 16
      %v260 = vrot.slane %v258, 5
      %v261 = vor.u32 %v257, %v260
      %v262 = vrot.slane %v261, 4
      %v264 = vshll.u32 %v200, 16
      %v266 = vrot.slane %v264, 5
      %v267 = vsel %vm229, %v262, %v266
      %v268 = vshrl.u32 %v200, 16
      %v270 = vrot.slane %v268, 4
      %v271 = vor.u32 %v270, %v266
      %v272 = vrot.slane %v271, 4
      %v274 = vshll.u32 %v201, 16
      %v276 = vrot.slane %v274, 5
      %v277 = vsel %vm229, %v272, %v276
      %v279 = vshrl.u32 %v202, 16
      %v281 = vrot.slane %v279, 4
      %v282 = vshll.u32 %v202, 16
      %v284 = vrot.slane %v282, 5
      %v285 = vor.u32 %v281, %v284
      %v286 = vrot.slane %v285, 4
      %v288 = vshll.u32 %v203, 16
      %v290 = vrot.slane %v288, 5
      %v291 = vsel %vm229, %v286, %v290
      %v292 = vshrl.u32 %v203, 16
      %v294 = vrot.slane %v292, 4
      %v295 = vor.u32 %v294, %v290
      %v296 = vrot.slane %v295, 4
      %v298 = vshll.u32 %v204, 16
      %v300 = vrot.slane %v298, 5
      %v301 = vsel %vm229, %v296, %v300
      %v303 = vshrl.u32 %v205, 16
      %v305 = vrot.slane %v303, 4
      %v306 = vshll.u32 %v205, 16
      %v308 = vrot.slane %v306, 5
      %v309 = vor.u32 %v305, %v308
      %v310 = vrot.slane %v309, 4
      %v312 = vshll.u32 %v206, 16
      %v314 = vrot.slane %v312, 5
      %v315 = vsel %vm229, %v310, %v314
      %v316 = vshrl.u32 %v206, 16
      %v318 = vrot.slane %v316, 4
      %v319 = vor.u32 %v318, %v314
      %v320 = vrot.slane %v319, 4
      %v322 = vshll.u32 %v207, 16
      %v324 = vrot.slane %v322, 5
      %v325 = vsel %vm229, %v320, %v324
      %v327 = vshrl.u32 %v208, 16
      %v329 = vrot.slane %v327, 4
      %v330 = vshll.u32 %v208, 16
      %v332 = vrot.slane %v330, 5
      %v333 = vor.u32 %v329, %v332
      %v334 = vrot.slane %v333, 4
      %v336 = vshll.u32 %v209, 16
      %v338 = vrot.slane %v336, 5
      %v339 = vsel %vm229, %v334, %v338
      %v340 = vshrl.u32 %v209, 16
      %v342 = vrot.slane %v340, 4
      %v343 = vor.u32 %v342, %v338
      %v344 = vrot.slane %v343, 4
      %v346 = vshll.u32 %v210, 16
      %v348 = vrot.slane %v346, 5
      %v349 = vsel %vm229, %v344, %v348
      %v351 = vshrl.u32 %v211, 16
      %v353 = vrot.slane %v351, 4
      %v354 = vshll.u32 %v211, 16
      %v356 = vrot.slane %v354, 5
      %v357 = vor.u32 %v353, %v356
      %v358 = vrot.slane %v357, 4
      %v360 = vshll.u32 %v212, 16
      %v362 = vrot.slane %v360, 5
      %v363 = vsel %vm229, %v358, %v362
      %v364 = vshrl.u32 %v212, 16
      %v366 = vrot.slane %v364, 4
      %v367 = vor.u32 %v366, %v362
      %v368 = vrot.slane %v367, 4
      %v370 = vshll.u32 %v213, 16
      %v372 = vrot.slane %v370, 5
      %v373 = vsel %vm229, %v368, %v372
      %v375 = vshrl.u32 %v214, 16
      %v377 = vrot.slane %v375, 4
      %v378 = vshll.u32 %v214, 16
      %v380 = vrot.slane %v378, 5
      %v381 = vor.u32 %v377, %v380
      %v382 = vrot.slane %v381, 4
      %v384 = vshll.u32 %v215, 16
      %v386 = vrot.slane %v384, 5
      %v387 = vsel %vm229, %v382, %v386
      %v388 = vshrl.u32 %v215, 16
      %v390 = vrot.slane %v388, 4
      %v391 = vor.u32 %v390, %v386
      %v392 = vrot.slane %v391, 4
      %v394 = vshll.u32 %v216, 16
      %v396 = vrot.slane %v394, 5
      %v397 = vsel %vm229, %v392, %v396
      %v399 = vshrl.u32 %v217, 16
      %v401 = vrot.slane %v399, 4
      %v402 = vshll.u32 %v217, 16
      %v404 = vrot.slane %v402, 5
      %v405 = vor.u32 %v401, %v404
      %v406 = vrot.slane %v405, 4
      %v408 = vshll.u32 %v218, 16
      %v410 = vrot.slane %v408, 5
      %v411 = vsel %vm229, %v406, %v410
      %v412 = vshrl.u32 %v218, 16
      %v414 = vrot.slane %v412, 4
      %v415 = vor.u32 %v414, %v410
      %v416 = vrot.slane %v415, 4
      %v418 = vshll.u32 %v219, 16
      %v420 = vrot.slane %v418, 5
      %v421 = vsel %vm229, %v416, %v420
      %s422 = scalar_lea.vmem %s1, 2
      %v423 = vld [vmem:[%s422] sm:$0x3]
      %v424 = vunpack.c.l.b16 %v243
      %v425 = vunpack.c.l.b16 %v253
      %v426 = vunpack.c.l.b16 %v267
      %v427 = vunpack.c.l.b16 %v277
      %v428 = vunpack.c.l.b16 %v291
      %v429 = vunpack.c.l.b16 %v301
      %v430 = vunpack.c.l.b16 %v315
      %v431 = vunpack.c.l.b16 %v325
      %v432 = vunpack.c.l.b16 %v339
      %v433 = vunpack.c.l.b16 %v349
      %v434 = vunpack.c.l.b16 %v363
      %v435 = vunpack.c.l.b16 %v373
      %v436 = vunpack.c.l.b16 %v387
      %v437 = vunpack.c.l.b16 %v397
      %v438 = vunpack.c.l.b16 %v411
      %v439 = vunpack.c.l.b16 %v421
      %v440 = vpack.c.b16 %v425, %v424
      %v441 = vpack.c.b16 %v427, %v426
      %v442 = vpack.c.b16 %v429, %v428
      %v443 = vpack.c.b16 %v431, %v430
      %v444 = vpack.c.b16 %v433, %v432
      %v445 = vpack.c.b16 %v435, %v434
      %v446 = vpack.c.b16 %v437, %v436
      %v447 = vpack.c.b16 %v439, %v438
      %vm448 = vcmask 31744
      %v450 = vsel %vm448, %v440, 0
      %v453 = vsel %vm448, %v441, 0
      %v456 = vsel %vm448, %v442, 0
      %v459 = vsel %vm448, %v443, 0
      %v462 = vsel %vm448, %v444, 0
      %v465 = vsel %vm448, %v445, 0
      %v468 = vsel %vm448, %v446, 0
      %v471 = vsel %vm448, %v447, 0
      %vm473 = vcmask 1041408
      %v475 = vsel %vm473, %v423, 0
      %477 = vmatpush.bf16.msra.mxu0 0
      %478 = vmatpush.bf16.msra.mxu0 0
      %479 = vmatpush.bf16.msra.mxu0 0
      %480 = vmatpush.bf16.msra.mxu0 0
      %481 = vmatpush.bf16.msra.mxu0 0
      %482 = vmatpush.bf16.msra.mxu0 0
      %483 = vmatpush.bf16.msra.mxu0 0
      %484 = vmatpush.bf16.msra.mxu0 %v475
      %485 = vmatmul.bf16.gmra.mxu0 %v450
      %v486 = vpop.f32.mrf.mxu0
      %v487 = vadd.f32 0.0, %v486
      %v488 = vpop.f32.mrf.mxu0
      %v489 = vadd.f32 0.0, %v488
      %490 = vmatmul.bf16.gmra.mxu0 %v453
      %v491 = vpop.f32.mrf.mxu0
      %v492 = vadd.f32 0.0, %v491
      %v493 = vpop.f32.mrf.mxu0
      %v494 = vadd.f32 0.0, %v493
      %495 = vmatmul.bf16.gmra.mxu0 %v456
      %v496 = vpop.f32.mrf.mxu0
      %v497 = vadd.f32 0.0, %v496
      %v498 = vpop.f32.mrf.mxu0
      %v499 = vadd.f32 0.0, %v498
      %500 = vmatmul.bf16.gmra.mxu0 %v459
      %v501 = vpop.f32.mrf.mxu0
      %v502 = vadd.f32 0.0, %v501
      %v503 = vpop.f32.mrf.mxu0
      %v504 = vadd.f32 0.0, %v503
      %505 = vmatmul.bf16.gmra.mxu0 %v462
      %v506 = vpop.f32.mrf.mxu0
      %v507 = vadd.f32 0.0, %v506
      %v508 = vpop.f32.mrf.mxu0
      %v509 = vadd.f32 0.0, %v508
      %510 = vmatmul.bf16.gmra.mxu0 %v465
      %v511 = vpop.f32.mrf.mxu0
      %v512 = vadd.f32 0.0, %v511
      %v513 = vpop.f32.mrf.mxu0
      %v514 = vadd.f32 0.0, %v513
      %515 = vmatmul.bf16.gmra.mxu0 %v468
      %v516 = vpop.f32.mrf.mxu0
      %v517 = vadd.f32 0.0, %v516
      %v518 = vpop.f32.mrf.mxu0
      %v519 = vadd.f32 0.0, %v518
      %520 = vmatmul.bf16.gmra.mxu0 %v471
      %v521 = vpop.f32.mrf.mxu0
      %v522 = vadd.f32 0.0, %v521
      %v523 = vpop.f32.mrf.mxu0
      %v524 = vadd.f32 0.0, %v523
      %525 = vdwg.mxu0
      %v542 = vunpack.c.l.b16 %v196
      %v543 = vunpack.c.l.b16 %v197
      %v544 = vunpack.c.l.b16 %v199
      %v545 = vunpack.c.l.b16 %v200
      %v546 = vunpack.c.l.b16 %v202
      %v547 = vunpack.c.l.b16 %v203
      %v548 = vunpack.c.l.b16 %v205
      %v549 = vunpack.c.l.b16 %v206
      %v550 = vunpack.c.l.b16 %v208
      %v551 = vunpack.c.l.b16 %v209
      %v552 = vunpack.c.l.b16 %v211
      %v553 = vunpack.c.l.b16 %v212
      %v554 = vunpack.c.l.b16 %v214
      %v555 = vunpack.c.l.b16 %v215
      %v556 = vunpack.c.l.b16 %v217
      %v557 = vunpack.c.l.b16 %v218
      %v558 = vpack.c.b16 %v543, %v542
      %v559 = vpack.c.b16 %v545, %v544
      %v560 = vpack.c.b16 %v547, %v546
      %v561 = vpack.c.b16 %v549, %v548
      %v562 = vpack.c.b16 %v551, %v550
      %v563 = vpack.c.b16 %v553, %v552
      %v564 = vpack.c.b16 %v555, %v554
      %v565 = vpack.c.b16 %v557, %v556
      %v567 = vsel %vm448, %v558, 0
      %v570 = vsel %vm448, %v559, 0
      %v573 = vsel %vm448, %v560, 0
      %v576 = vsel %vm448, %v561, 0
      %v579 = vsel %vm448, %v562, 0
      %v582 = vsel %vm448, %v563, 0
      %v585 = vsel %vm448, %v564, 0
      %v588 = vsel %vm448, %v565, 0
      %v591 = vsel %vm473, %v226, 0
      %593 = vmatpush.bf16.msra.mxu0 0
      %594 = vmatpush.bf16.msra.mxu0 0
      %595 = vmatpush.bf16.msra.mxu0 0
      %596 = vmatpush.bf16.msra.mxu0 0
      %597 = vmatpush.bf16.msra.mxu0 0
      %598 = vmatpush.bf16.msra.mxu0 0
      %599 = vmatpush.bf16.msra.mxu0 0
      %600 = vmatpush.bf16.msra.mxu0 %v591
      %601 = vmatmul.bf16.gmra.mxu0 %v567
      %v602 = vpop.f32.mrf.mxu0
      %v603 = vadd.f32 %v487, %v602
      %v604 = vpop.f32.mrf.mxu0
      %v605 = vadd.f32 %v489, %v604
      %606 = vmatmul.bf16.gmra.mxu0 %v570
      %v607 = vpop.f32.mrf.mxu0
      %v608 = vadd.f32 %v492, %v607
      %v609 = vpop.f32.mrf.mxu0
      %v610 = vadd.f32 %v494, %v609
      %611 = vmatmul.bf16.gmra.mxu0 %v573
      %v612 = vpop.f32.mrf.mxu0
      %v613 = vadd.f32 %v497, %v612
      %v614 = vpop.f32.mrf.mxu0
      %v615 = vadd.f32 %v499, %v614
      %616 = vmatmul.bf16.gmra.mxu0 %v576
      %v617 = vpop.f32.mrf.mxu0
      %v618 = vadd.f32 %v502, %v617
      %v619 = vpop.f32.mrf.mxu0
      %v620 = vadd.f32 %v504, %v619
      %621 = vmatmul.bf16.gmra.mxu0 %v579
      %v622 = vpop.f32.mrf.mxu0
      %v623 = vadd.f32 %v507, %v622
      %v624 = vpop.f32.mrf.mxu0
      %v625 = vadd.f32 %v509, %v624
      %626 = vmatmul.bf16.gmra.mxu0 %v582
      %v627 = vpop.f32.mrf.mxu0
      %v628 = vadd.f32 %v512, %v627
      %v629 = vpop.f32.mrf.mxu0
      %v630 = vadd.f32 %v514, %v629
      %631 = vmatmul.bf16.gmra.mxu0 %v585
      %v632 = vpop.f32.mrf.mxu0
      %v633 = vadd.f32 %v517, %v632
      %v634 = vpop.f32.mrf.mxu0
      %v635 = vadd.f32 %v519, %v634
      %636 = vmatmul.bf16.gmra.mxu0 %v588
      %v637 = vpop.f32.mrf.mxu0
      %v638 = vadd.f32 %v522, %v637
      %v639 = vpop.f32.mrf.mxu0
      %v640 = vadd.f32 %v524, %v639
      %641 = vdwg.mxu0
      %vm650 = vcmask 1042432
      %vm651 = vcmask 1046532
      %vm652 = vmor %vm650, %vm651
      %v653 = vrot.slane %v196, 5
      %v654 = vrot.slane %v653, 4
      %v655 = vrot.slane %v197, 5
      %v656 = vsel %vm652, %v654, %v655
      %v657 = vrot.slane %v655, 4
      %v658 = vrot.slane %v198, 5
      %v659 = vsel %vm652, %v657, %v658
      %v660 = vrot.slane %v199, 5
      %v661 = vrot.slane %v660, 4
      %v662 = vrot.slane %v200, 5
      %v663 = vsel %vm652, %v661, %v662
      %v664 = vrot.slane %v662, 4
      %v665 = vrot.slane %v201, 5
      %v666 = vsel %vm652, %v664, %v665
      %v667 = vrot.slane %v202, 5
      %v668 = vrot.slane %v667, 4
      %v669 = vrot.slane %v203, 5
      %v670 = vsel %vm652, %v668, %v669
      %v671 = vrot.slane %v669, 4
      %v672 = vrot.slane %v204, 5
      %v673 = vsel %vm652, %v671, %v672
      %v674 = vrot.slane %v205, 5
      %v675 = vrot.slane %v674, 4
      %v676 = vrot.slane %v206, 5
      %v677 = vsel %vm652, %v675, %v676
      %v678 = vrot.slane %v676, 4
      %v679 = vrot.slane %v207, 5
      %v680 = vsel %vm652, %v678, %v679
      %v681 = vrot.slane %v208, 5
      %v682 = vrot.slane %v681, 4
      %v683 = vrot.slane %v209, 5
      %v684 = vsel %vm652, %v682, %v683
      %v685 = vrot.slane %v683, 4
      %v686 = vrot.slane %v210, 5
      %v687 = vsel %vm652, %v685, %v686
      %v688 = vrot.slane %v211, 5
      %v689 = vrot.slane %v688, 4
      %v690 = vrot.slane %v212, 5
      %v691 = vsel %vm652, %v689, %v690
      %v692 = vrot.slane %v690, 4
      %v693 = vrot.slane %v213, 5
      %v694 = vsel %vm652, %v692, %v693
      %v695 = vrot.slane %v214, 5
      %v696 = vrot.slane %v695, 4
      %v697 = vrot.slane %v215, 5
      %v698 = vsel %vm652, %v696, %v697
      %v699 = vrot.slane %v697, 4
      %v700 = vrot.slane %v216, 5
      %v701 = vsel %vm652, %v699, %v700
      %v702 = vrot.slane %v217, 5
      %v703 = vrot.slane %v702, 4
      %v704 = vrot.slane %v218, 5
      %v705 = vsel %vm652, %v703, %v704
      %v706 = vrot.slane %v704, 4
      %v707 = vrot.slane %v219, 5
      %v708 = vsel %vm652, %v706, %v707
      %s709 = scalar_lea.vmem %s1, 4
      %v710 = vld [vmem:[%s709] sm:$0x3]
      %v711 = vunpack.c.l.b16 %v656
      %v712 = vunpack.c.l.b16 %v659
      %v713 = vunpack.c.l.b16 %v663
      %v714 = vunpack.c.l.b16 %v666
      %v715 = vunpack.c.l.b16 %v670
      %v716 = vunpack.c.l.b16 %v673
      %v717 = vunpack.c.l.b16 %v677
      %v718 = vunpack.c.l.b16 %v680
      %v719 = vunpack.c.l.b16 %v684
      %v720 = vunpack.c.l.b16 %v687
      %v721 = vunpack.c.l.b16 %v691
      %v722 = vunpack.c.l.b16 %v694
      %v723 = vunpack.c.l.b16 %v698
      %v724 = vunpack.c.l.b16 %v701
      %v725 = vunpack.c.l.b16 %v705
      %v726 = vunpack.c.l.b16 %v708
      %v727 = vpack.c.b16 %v712, %v711
      %v728 = vpack.c.b16 %v714, %v713
      %v729 = vpack.c.b16 %v716, %v715
      %v730 = vpack.c.b16 %v718, %v717
      %v731 = vpack.c.b16 %v720, %v719
      %v732 = vpack.c.b16 %v722, %v721
      %v733 = vpack.c.b16 %v724, %v723
      %v734 = vpack.c.b16 %v726, %v725
      %v736 = vsel %vm448, %v727, 0
      %v739 = vsel %vm448, %v728, 0
      %v742 = vsel %vm448, %v729, 0
      %v745 = vsel %vm448, %v730, 0
      %v748 = vsel %vm448, %v731, 0
      %v751 = vsel %vm448, %v732, 0
      %v754 = vsel %vm448, %v733, 0
      %v757 = vsel %vm448, %v734, 0
      %v760 = vsel %vm473, %v710, 0
      %762 = vmatpush.bf16.msra.mxu0 0
      %763 = vmatpush.bf16.msra.mxu0 0
      %764 = vmatpush.bf16.msra.mxu0 0
      %765 = vmatpush.bf16.msra.mxu0 0
      %766 = vmatpush.bf16.msra.mxu0 0
      %767 = vmatpush.bf16.msra.mxu0 0
      %768 = vmatpush.bf16.msra.mxu0 0
      %769 = vmatpush.bf16.msra.mxu0 %v760
      %770 = vmatmul.bf16.gmra.mxu0 %v736
      %v771 = vpop.f32.mrf.mxu0
      %v772 = vadd.f32 0.0, %v771
      %v773 = vpop.f32.mrf.mxu0
      %v774 = vadd.f32 0.0, %v773
      %775 = vmatmul.bf16.gmra.mxu0 %v739
      %v776 = vpop.f32.mrf.mxu0
      %v777 = vadd.f32 0.0, %v776
      %v778 = vpop.f32.mrf.mxu0
      %v779 = vadd.f32 0.0, %v778
      %780 = vmatmul.bf16.gmra.mxu0 %v742
      %v781 = vpop.f32.mrf.mxu0
      %v782 = vadd.f32 0.0, %v781
      %v783 = vpop.f32.mrf.mxu0
      %v784 = vadd.f32 0.0, %v783
      %785 = vmatmul.bf16.gmra.mxu0 %v745
      %v786 = vpop.f32.mrf.mxu0
      %v787 = vadd.f32 0.0, %v786
      %v788 = vpop.f32.mrf.mxu0
      %v789 = vadd.f32 0.0, %v788
      %790 = vmatmul.bf16.gmra.mxu0 %v748
      %v791 = vpop.f32.mrf.mxu0
      %v792 = vadd.f32 0.0, %v791
      %v793 = vpop.f32.mrf.mxu0
      %v794 = vadd.f32 0.0, %v793
      %795 = vmatmul.bf16.gmra.mxu0 %v751
      %v796 = vpop.f32.mrf.mxu0
      %v797 = vadd.f32 0.0, %v796
      %v798 = vpop.f32.mrf.mxu0
      %v799 = vadd.f32 0.0, %v798
      %800 = vmatmul.bf16.gmra.mxu0 %v754
      %v801 = vpop.f32.mrf.mxu0
      %v802 = vadd.f32 0.0, %v801
      %v803 = vpop.f32.mrf.mxu0
      %v804 = vadd.f32 0.0, %v803
      %805 = vmatmul.bf16.gmra.mxu0 %v757
      %v806 = vpop.f32.mrf.mxu0
      %v807 = vadd.f32 0.0, %v806
      %v808 = vpop.f32.mrf.mxu0
      %v809 = vadd.f32 0.0, %v808
      %810 = vdwg.mxu0
      %v811 = vadd.f32 %v603, %v772
      %v812 = vadd.f32 %v605, %v774
      %v813 = vadd.f32 %v608, %v777
      %v814 = vadd.f32 %v610, %v779
      %v815 = vadd.f32 %v613, %v782
      %v816 = vadd.f32 %v615, %v784
      %v817 = vadd.f32 %v618, %v787
      %v818 = vadd.f32 %v620, %v789
      %v819 = vadd.f32 %v623, %v792
      %v820 = vadd.f32 %v625, %v794
      %v821 = vadd.f32 %v628, %v797
      %v822 = vadd.f32 %v630, %v799
      %v823 = vadd.f32 %v633, %v802
      %v824 = vadd.f32 %v635, %v804
      %v825 = vadd.f32 %v638, %v807
      %v826 = vadd.f32 %v640, %v809
      %s827 = scalar_lea.vmem %s1, 6
      %v828 = vld [vmem:[%s827] sm:$0x3]
      %v831 = vunpack.c.l.b16 %v220
      %v832 = vunpack.c.l.b16 %v221
      %v833 = vpack.c.b16 %v832, %v831
      %v835 = vsel %vm448, %v833, 0
      %v838 = vsel %vm473, %v828, 0
      %840 = vmatpush.bf16.msra.mxu0 0
      %841 = vmatpush.bf16.msra.mxu0 0
      %842 = vmatpush.bf16.msra.mxu0 0
      %843 = vmatpush.bf16.msra.mxu0 0
      %844 = vmatpush.bf16.msra.mxu0 0
      %845 = vmatpush.bf16.msra.mxu0 0
      %846 = vmatpush.bf16.msra.mxu0 0
      %847 = vmatpush.bf16.msra.mxu0 %v838
      %848 = vmatmul.bf16.gmra.mxu0 %v570
      %v849 = vpop.f32.mrf.mxu0
      %v850 = vadd.f32 0.0, %v849
      %v851 = vpop.f32.mrf.mxu0
      %v852 = vadd.f32 0.0, %v851
      %853 = vmatmul.bf16.gmra.mxu0 %v573
      %v854 = vpop.f32.mrf.mxu0
      %v855 = vadd.f32 0.0, %v854
      %v856 = vpop.f32.mrf.mxu0
      %v857 = vadd.f32 0.0, %v856
      %858 = vmatmul.bf16.gmra.mxu0 %v576
      %v859 = vpop.f32.mrf.mxu0
      %v860 = vadd.f32 0.0, %v859
      %v861 = vpop.f32.mrf.mxu0
      %v862 = vadd.f32 0.0, %v861
      %863 = vmatmul.bf16.gmra.mxu0 %v579
      %v864 = vpop.f32.mrf.mxu0
      %v865 = vadd.f32 0.0, %v864
      %v866 = vpop.f32.mrf.mxu0
      %v867 = vadd.f32 0.0, %v866
      %868 = vmatmul.bf16.gmra.mxu0 %v582
      %v869 = vpop.f32.mrf.mxu0
      %v870 = vadd.f32 0.0, %v869
      %v871 = vpop.f32.mrf.mxu0
      %v872 = vadd.f32 0.0, %v871
      %873 = vmatmul.bf16.gmra.mxu0 %v585
      %v874 = vpop.f32.mrf.mxu0
      %v875 = vadd.f32 0.0, %v874
      %v876 = vpop.f32.mrf.mxu0
      %v877 = vadd.f32 0.0, %v876
      %878 = vmatmul.bf16.gmra.mxu0 %v588
      %v879 = vpop.f32.mrf.mxu0
      %v880 = vadd.f32 0.0, %v879
      %v881 = vpop.f32.mrf.mxu0
      %v882 = vadd.f32 0.0, %v881
      %883 = vmatmul.bf16.gmra.mxu0 %v835
      %v884 = vpop.f32.mrf.mxu0
      %v885 = vadd.f32 0.0, %v884
      %v886 = vpop.f32.mrf.mxu0
      %v887 = vadd.f32 0.0, %v886
      %888 = vdwg.mxu0
      %v889 = vadd.f32 %v811, %v850
      %v890 = vadd.f32 %v812, %v852
      %v891 = vadd.f32 %v813, %v855
      %v892 = vadd.f32 %v814, %v857
      %v893 = vadd.f32 %v815, %v860
      %v894 = vadd.f32 %v816, %v862
      %v895 = vadd.f32 %v817, %v865
      %v896 = vadd.f32 %v818, %v867
      %v897 = vadd.f32 %v819, %v870
      %v898 = vadd.f32 %v820, %v872
      %v899 = vadd.f32 %v821, %v875
      %v900 = vadd.f32 %v822, %v877
      %v901 = vadd.f32 %v823, %v880
      %v902 = vadd.f32 %v824, %v882
      %v903 = vadd.f32 %v825, %v885
      %v904 = vadd.f32 %v826, %v887
      %v906 = vshrl.u32 %v220, 16
      %v908 = vrot.slane %v906, 4
      %v909 = vshll.u32 %v220, 16
      %v911 = vrot.slane %v909, 5
      %v912 = vor.u32 %v908, %v911
      %v913 = vrot.slane %v912, 4
      %v915 = vshll.u32 %v221, 16
      %v917 = vrot.slane %v915, 5
      %v918 = vsel %vm229, %v913, %v917
      %v919 = vshrl.u32 %v221, 16
      %v921 = vrot.slane %v919, 4
      %v922 = vor.u32 %v921, %v917
      %v923 = vrot.slane %v922, 4
      %v925 = vshll.u32 %v222, 16
      %v927 = vrot.slane %v925, 5
      %v928 = vsel %vm229, %v923, %v927
      %s929 = scalar_lea.vmem %s1, 8
      %v930 = vld [vmem:[%s929] sm:$0x3]
      %v931 = vunpack.c.l.b16 %v918
      %v932 = vunpack.c.l.b16 %v928
      %v933 = vpack.c.b16 %v932, %v931
      %v935 = vsel %vm448, %v933, 0
      %v938 = vsel %vm473, %v930, 0
      %940 = vmatpush.bf16.msra.mxu0 0
      %941 = vmatpush.bf16.msra.mxu0 0
      %942 = vmatpush.bf16.msra.mxu0 0
      %943 = vmatpush.bf16.msra.mxu0 0
      %944 = vmatpush.bf16.msra.mxu0 0
      %945 = vmatpush.bf16.msra.mxu0 0
      %946 = vmatpush.bf16.msra.mxu0 0
      %947 = vmatpush.bf16.msra.mxu0 %v938
      %948 = vmatmul.bf16.gmra.mxu0 %v453
      %v949 = vpop.f32.mrf.mxu0
      %v950 = vadd.f32 0.0, %v949
      %v951 = vpop.f32.mrf.mxu0
      %v952 = vadd.f32 0.0, %v951
      %953 = vmatmul.bf16.gmra.mxu0 %v456
      %v954 = vpop.f32.mrf.mxu0
      %v955 = vadd.f32 0.0, %v954
      %v956 = vpop.f32.mrf.mxu0
      %v957 = vadd.f32 0.0, %v956
      %958 = vmatmul.bf16.gmra.mxu0 %v459
      %v959 = vpop.f32.mrf.mxu0
      %v960 = vadd.f32 0.0, %v959
      %v961 = vpop.f32.mrf.mxu0
      %v962 = vadd.f32 0.0, %v961
      %963 = vmatmul.bf16.gmra.mxu0 %v462
      %v964 = vpop.f32.mrf.mxu0
      %v965 = vadd.f32 0.0, %v964
      %v966 = vpop.f32.mrf.mxu0
      %v967 = vadd.f32 0.0, %v966
      %968 = vmatmul.bf16.gmra.mxu0 %v465
      %v969 = vpop.f32.mrf.mxu0
      %v970 = vadd.f32 0.0, %v969
      %v971 = vpop.f32.mrf.mxu0
      %v972 = vadd.f32 0.0, %v971
      %973 = vmatmul.bf16.gmra.mxu0 %v468
      %v974 = vpop.f32.mrf.mxu0
      %v975 = vadd.f32 0.0, %v974
      %v976 = vpop.f32.mrf.mxu0
      %v977 = vadd.f32 0.0, %v976
      %978 = vmatmul.bf16.gmra.mxu0 %v471
      %v979 = vpop.f32.mrf.mxu0
      %v980 = vadd.f32 0.0, %v979
      %v981 = vpop.f32.mrf.mxu0
      %v982 = vadd.f32 0.0, %v981
      %983 = vmatmul.bf16.gmra.mxu0 %v935
      %v984 = vpop.f32.mrf.mxu0
      %v985 = vadd.f32 0.0, %v984
      %v986 = vpop.f32.mrf.mxu0
      %v987 = vadd.f32 0.0, %v986
      %988 = vdwg.mxu0
      %v989 = vadd.f32 %v889, %v950
      %v990 = vadd.f32 %v890, %v952
      %v991 = vadd.f32 %v891, %v955
      %v992 = vadd.f32 %v892, %v957
      %v993 = vadd.f32 %v893, %v960
      %v994 = vadd.f32 %v894, %v962
      %v995 = vadd.f32 %v895, %v965
      %v996 = vadd.f32 %v896, %v967
      %v997 = vadd.f32 %v897, %v970
      %v998 = vadd.f32 %v898, %v972
      %v999 = vadd.f32 %v899, %v975
      %v1000 = vadd.f32 %v900, %v977
      %v1001 = vadd.f32 %v901, %v980
      %v1002 = vadd.f32 %v902, %v982
      %v1003 = vadd.f32 %v903, %v985
      %v1004 = vadd.f32 %v904, %v987
      %v1006 = vrot.slane %v220, 5
      %v1007 = vrot.slane %v1006, 4
      %v1008 = vrot.slane %v221, 5
      %v1009 = vsel %vm652, %v1007, %v1008
      %v1010 = vrot.slane %v1008, 4
      %v1011 = vrot.slane %v222, 5
      %v1012 = vsel %vm652, %v1010, %v1011
      %s1013 = scalar_lea.vmem %s1, 10
      %v1014 = vld [vmem:[%s1013] sm:$0x3]
      %v1015 = vunpack.c.l.b16 %v1009
      %v1016 = vunpack.c.l.b16 %v1012
      %v1017 = vpack.c.b16 %v1016, %v1015
      %v1019 = vsel %vm448, %v1017, 0
      %v1022 = vsel %vm473, %v1014, 0
      %1024 = vmatpush.bf16.msra.mxu0 0
      %1025 = vmatpush.bf16.msra.mxu0 0
      %1026 = vmatpush.bf16.msra.mxu0 0
      %1027 = vmatpush.bf16.msra.mxu0 0
      %1028 = vmatpush.bf16.msra.mxu0 0
      %1029 = vmatpush.bf16.msra.mxu0 0
      %1030 = vmatpush.bf16.msra.mxu0 0
      %1031 = vmatpush.bf16.msra.mxu0 %v1022
      %1032 = vmatmul.bf16.gmra.mxu0 %v739
      %v1033 = vpop.f32.mrf.mxu0
      %v1034 = vadd.f32 0.0, %v1033
      %v1035 = vpop.f32.mrf.mxu0
      %v1036 = vadd.f32 0.0, %v1035
      %1037 = vmatmul.bf16.gmra.mxu0 %v742
      %v1038 = vpop.f32.mrf.mxu0
      %v1039 = vadd.f32 0.0, %v1038
      %v1040 = vpop.f32.mrf.mxu0
      %v1041 = vadd.f32 0.0, %v1040
      %1042 = vmatmul.bf16.gmra.mxu0 %v745
      %v1043 = vpop.f32.mrf.mxu0
      %v1044 = vadd.f32 0.0, %v1043
      %v1045 = vpop.f32.mrf.mxu0
      %v1046 = vadd.f32 0.0, %v1045
      %1047 = vmatmul.bf16.gmra.mxu0 %v748
      %v1048 = vpop.f32.mrf.mxu0
      %v1049 = vadd.f32 0.0, %v1048
      %v1050 = vpop.f32.mrf.mxu0
      %v1051 = vadd.f32 0.0, %v1050
      %1052 = vmatmul.bf16.gmra.mxu0 %v751
      %v1053 = vpop.f32.mrf.mxu0
      %v1054 = vadd.f32 0.0, %v1053
      %v1055 = vpop.f32.mrf.mxu0
      %v1056 = vadd.f32 0.0, %v1055
      %1057 = vmatmul.bf16.gmra.mxu0 %v754
      %v1058 = vpop.f32.mrf.mxu0
      %v1059 = vadd.f32 0.0, %v1058
      %v1060 = vpop.f32.mrf.mxu0
      %v1061 = vadd.f32 0.0, %v1060
      %1062 = vmatmul.bf16.gmra.mxu0 %v757
      %v1063 = vpop.f32.mrf.mxu0
      %v1064 = vadd.f32 0.0, %v1063
      %v1065 = vpop.f32.mrf.mxu0
      %v1066 = vadd.f32 0.0, %v1065
      %1067 = vmatmul.bf16.gmra.mxu0 %v1019
      %v1068 = vpop.f32.mrf.mxu0
      %v1069 = vadd.f32 0.0, %v1068
      %v1070 = vpop.f32.mrf.mxu0
      %v1071 = vadd.f32 0.0, %v1070
      %1072 = vdwg.mxu0
      %v1073 = vadd.f32 %v989, %v1034
      %v1074 = vadd.f32 %v990, %v1036
      %v1075 = vadd.f32 %v991, %v1039
      %v1076 = vadd.f32 %v992, %v1041
      %v1077 = vadd.f32 %v993, %v1044
      %v1078 = vadd.f32 %v994, %v1046
      %v1079 = vadd.f32 %v995, %v1049
      %v1080 = vadd.f32 %v996, %v1051
      %v1081 = vadd.f32 %v997, %v1054
      %v1082 = vadd.f32 %v998, %v1056
      %v1083 = vadd.f32 %v999, %v1059
      %v1084 = vadd.f32 %v1000, %v1061
      %v1085 = vadd.f32 %v1001, %v1064
      %v1086 = vadd.f32 %v1002, %v1066
      %v1087 = vadd.f32 %v1003, %v1069
      %v1088 = vadd.f32 %v1004, %v1071
      %s1089 = scalar_lea.vmem %s1, 12
      %v1090 = vld [vmem:[%s1089] sm:$0x3]
      %v1093 = vunpack.c.l.b16 %v223
      %v1094 = vunpack.c.l.b16 %v224
      %v1095 = vpack.c.b16 %v1094, %v1093
      %v1097 = vsel %vm448, %v1095, 0
      %v1100 = vsel %vm473, %v1090, 0
      %1102 = vmatpush.bf16.msra.mxu0 0
      %1103 = vmatpush.bf16.msra.mxu0 0
      %1104 = vmatpush.bf16.msra.mxu0 0
      %1105 = vmatpush.bf16.msra.mxu0 0
      %1106 = vmatpush.bf16.msra.mxu0 0
      %1107 = vmatpush.bf16.msra.mxu0 0
      %1108 = vmatpush.bf16.msra.mxu0 0
      %1109 = vmatpush.bf16.msra.mxu0 %v1100
      %1110 = vmatmul.bf16.gmra.mxu0 %v573
      %v1111 = vpop.f32.mrf.mxu0
      %v1112 = vadd.f32 0.0, %v1111
      %v1113 = vpop.f32.mrf.mxu0
      %v1114 = vadd.f32 0.0, %v1113
      %1115 = vmatmul.bf16.gmra.mxu0 %v576
      %v1116 = vpop.f32.mrf.mxu0
      %v1117 = vadd.f32 0.0, %v1116
      %v1118 = vpop.f32.mrf.mxu0
      %v1119 = vadd.f32 0.0, %v1118
      %1120 = vmatmul.bf16.gmra.mxu0 %v579
      %v1121 = vpop.f32.mrf.mxu0
      %v1122 = vadd.f32 0.0, %v1121
      %v1123 = vpop.f32.mrf.mxu0
      %v1124 = vadd.f32 0.0, %v1123
      %1125 = vmatmul.bf16.gmra.mxu0 %v582
      %v1126 = vpop.f32.mrf.mxu0
      %v1127 = vadd.f32 0.0, %v1126
      %v1128 = vpop.f32.mrf.mxu0
      %v1129 = vadd.f32 0.0, %v1128
      %1130 = vmatmul.bf16.gmra.mxu0 %v585
      %v1131 = vpop.f32.mrf.mxu0
      %v1132 = vadd.f32 0.0, %v1131
      %v1133 = vpop.f32.mrf.mxu0
      %v1134 = vadd.f32 0.0, %v1133
      %1135 = vmatmul.bf16.gmra.mxu0 %v588
      %v1136 = vpop.f32.mrf.mxu0
      %v1137 = vadd.f32 0.0, %v1136
      %v1138 = vpop.f32.mrf.mxu0
      %v1139 = vadd.f32 0.0, %v1138
      %1140 = vmatmul.bf16.gmra.mxu0 %v835
      %v1141 = vpop.f32.mrf.mxu0
      %v1142 = vadd.f32 0.0, %v1141
      %v1143 = vpop.f32.mrf.mxu0
      %v1144 = vadd.f32 0.0, %v1143
      %1145 = vmatmul.bf16.gmra.mxu0 %v1097
      %v1146 = vpop.f32.mrf.mxu0
      %v1147 = vadd.f32 0.0, %v1146
      %v1148 = vpop.f32.mrf.mxu0
      %v1149 = vadd.f32 0.0, %v1148
      %1150 = vdwg.mxu0
      %v1151 = vadd.f32 %v1073, %v1112
      %v1152 = vadd.f32 %v1074, %v1114
      %v1153 = vadd.f32 %v1075, %v1117
      %v1154 = vadd.f32 %v1076, %v1119
      %v1155 = vadd.f32 %v1077, %v1122
      %v1156 = vadd.f32 %v1078, %v1124
      %v1157 = vadd.f32 %v1079, %v1127
      %v1158 = vadd.f32 %v1080, %v1129
      %v1159 = vadd.f32 %v1081, %v1132
      %v1160 = vadd.f32 %v1082, %v1134
      %v1161 = vadd.f32 %v1083, %v1137
      %v1162 = vadd.f32 %v1084, %v1139
      %v1163 = vadd.f32 %v1085, %v1142
      %v1164 = vadd.f32 %v1086, %v1144
      %v1165 = vadd.f32 %v1087, %v1147
      %v1166 = vadd.f32 %v1088, %v1149
      %v1168 = vshrl.u32 %v223, 16
      %v1170 = vrot.slane %v1168, 4
      %v1171 = vshll.u32 %v223, 16
      %v1173 = vrot.slane %v1171, 5
      %v1174 = vor.u32 %v1170, %v1173
      %v1175 = vrot.slane %v1174, 4
      %v1177 = vshll.u32 %v224, 16
      %v1179 = vrot.slane %v1177, 5
      %v1180 = vsel %vm229, %v1175, %v1179
      %v1181 = vshrl.u32 %v224, 16
      %v1183 = vrot.slane %v1181, 4
      %v1184 = vor.u32 %v1183, %v1179
      %v1185 = vrot.slane %v1184, 4
      %v1187 = vshll.u32 %v225, 16
      %v1189 = vrot.slane %v1187, 5
      %v1190 = vsel %vm229, %v1185, %v1189
      %s1191 = scalar_lea.vmem %s1, 14
      %v1192 = vld [vmem:[%s1191] sm:$0x3]
      %v1193 = vunpack.c.l.b16 %v1180
      %v1194 = vunpack.c.l.b16 %v1190
      %v1195 = vpack.c.b16 %v1194, %v1193
      %v1197 = vsel %vm448, %v1195, 0
      %v1200 = vsel %vm473, %v1192, 0
      %1202 = vmatpush.bf16.msra.mxu0 0
      %1203 = vmatpush.bf16.msra.mxu0 0
      %1204 = vmatpush.bf16.msra.mxu0 0
      %1205 = vmatpush.bf16.msra.mxu0 0
      %1206 = vmatpush.bf16.msra.mxu0 0
      %1207 = vmatpush.bf16.msra.mxu0 0
      %1208 = vmatpush.bf16.msra.mxu0 0
      %1209 = vmatpush.bf16.msra.mxu0 %v1200
      %1210 = vmatmul.bf16.gmra.mxu0 %v456
      %v1211 = vpop.f32.mrf.mxu0
      %v1212 = vadd.f32 0.0, %v1211
      %v1213 = vpop.f32.mrf.mxu0
      %v1214 = vadd.f32 0.0, %v1213
      %1215 = vmatmul.bf16.gmra.mxu0 %v459
      %v1216 = vpop.f32.mrf.mxu0
      %v1217 = vadd.f32 0.0, %v1216
      %v1218 = vpop.f32.mrf.mxu0
      %v1219 = vadd.f32 0.0, %v1218
      %1220 = vmatmul.bf16.gmra.mxu0 %v462
      %v1221 = vpop.f32.mrf.mxu0
      %v1222 = vadd.f32 0.0, %v1221
      %v1223 = vpop.f32.mrf.mxu0
      %v1224 = vadd.f32 0.0, %v1223
      %1225 = vmatmul.bf16.gmra.mxu0 %v465
      %v1226 = vpop.f32.mrf.mxu0
      %v1227 = vadd.f32 0.0, %v1226
      %v1228 = vpop.f32.mrf.mxu0
      %v1229 = vadd.f32 0.0, %v1228
      %1230 = vmatmul.bf16.gmra.mxu0 %v468
      %v1231 = vpop.f32.mrf.mxu0
      %v1232 = vadd.f32 0.0, %v1231
      %v1233 = vpop.f32.mrf.mxu0
      %v1234 = vadd.f32 0.0, %v1233
      %1235 = vmatmul.bf16.gmra.mxu0 %v471
      %v1236 = vpop.f32.mrf.mxu0
      %v1237 = vadd.f32 0.0, %v1236
      %v1238 = vpop.f32.mrf.mxu0
      %v1239 = vadd.f32 0.0, %v1238
      %1240 = vmatmul.bf16.gmra.mxu0 %v935
      %v1241 = vpop.f32.mrf.mxu0
      %v1242 = vadd.f32 0.0, %v1241
      %v1243 = vpop.f32.mrf.mxu0
      %v1244 = vadd.f32 0.0, %v1243
      %1245 = vmatmul.bf16.gmra.mxu0 %v1197
      %v1246 = vpop.f32.mrf.mxu0
      %v1247 = vadd.f32 0.0, %v1246
      %v1248 = vpop.f32.mrf.mxu0
      %v1249 = vadd.f32 0.0, %v1248
      %1250 = vdwg.mxu0
      %v1251 = vadd.f32 %v1151, %v1212
      %v1252 = vadd.f32 %v1152, %v1214
      %v1253 = vadd.f32 %v1153, %v1217
      %v1254 = vadd.f32 %v1154, %v1219
      %v1255 = vadd.f32 %v1155, %v1222
      %v1256 = vadd.f32 %v1156, %v1224
      %v1257 = vadd.f32 %v1157, %v1227
      %v1258 = vadd.f32 %v1158, %v1229
      %v1259 = vadd.f32 %v1159, %v1232
      %v1260 = vadd.f32 %v1160, %v1234
      %v1261 = vadd.f32 %v1161, %v1237
      %v1262 = vadd.f32 %v1162, %v1239
      %v1263 = vadd.f32 %v1163, %v1242
      %v1264 = vadd.f32 %v1164, %v1244
      %v1265 = vadd.f32 %v1165, %v1247
      %v1266 = vadd.f32 %v1166, %v1249
      %v1268 = vrot.slane %v223, 5
      %v1269 = vrot.slane %v1268, 4
      %v1270 = vrot.slane %v224, 5
      %v1271 = vsel %vm652, %v1269, %v1270
      %v1272 = vrot.slane %v1270, 4
      %v1273 = vrot.slane %v225, 5
      %v1274 = vsel %vm652, %v1272, %v1273
      %s1275 = scalar_lea.vmem %s1, 16
      %v1276 = vld [vmem:[%s1275] sm:$0x3]
      %v1277 = vunpack.c.l.b16 %v1271
      %v1278 = vunpack.c.l.b16 %v1274
      %v1279 = vpack.c.b16 %v1278, %v1277
      %v1281 = vsel %vm448, %v1279, 0
      %v1284 = vsel %vm473, %v1276, 0
      %1286 = vmatpush.bf16.msra.mxu0 0
      %1287 = vmatpush.bf16.msra.mxu0 0
      %1288 = vmatpush.bf16.msra.mxu0 0
      %1289 = vmatpush.bf16.msra.mxu0 0
      %1290 = vmatpush.bf16.msra.mxu0 0
      %1291 = vmatpush.bf16.msra.mxu0 0
      %1292 = vmatpush.bf16.msra.mxu0 0
      %1293 = vmatpush.bf16.msra.mxu0 %v1284
      %1294 = vmatmul.bf16.gmra.mxu0 %v742
      %v1295 = vpop.f32.mrf.mxu0
      %v1296 = vadd.f32 0.0, %v1295
      %v1297 = vpop.f32.mrf.mxu0
      %v1298 = vadd.f32 0.0, %v1297
      %1299 = vmatmul.bf16.gmra.mxu0 %v745
      %v1300 = vpop.f32.mrf.mxu0
      %v1301 = vadd.f32 0.0, %v1300
      %v1302 = vpop.f32.mrf.mxu0
      %v1303 = vadd.f32 0.0, %v1302
      %1304 = vmatmul.bf16.gmra.mxu0 %v748
      %v1305 = vpop.f32.mrf.mxu0
      %v1306 = vadd.f32 0.0, %v1305
      %v1307 = vpop.f32.mrf.mxu0
      %v1308 = vadd.f32 0.0, %v1307
      %1309 = vmatmul.bf16.gmra.mxu0 %v751
      %v1310 = vpop.f32.mrf.mxu0
      %v1311 = vadd.f32 0.0, %v1310
      %v1312 = vpop.f32.mrf.mxu0
      %v1313 = vadd.f32 0.0, %v1312
      %1314 = vmatmul.bf16.gmra.mxu0 %v754
      %v1315 = vpop.f32.mrf.mxu0
      %v1316 = vadd.f32 0.0, %v1315
      %v1317 = vpop.f32.mrf.mxu0
      %v1318 = vadd.f32 0.0, %v1317
      %1319 = vmatmul.bf16.gmra.mxu0 %v757
      %v1320 = vpop.f32.mrf.mxu0
      %v1321 = vadd.f32 0.0, %v1320
      %v1322 = vpop.f32.mrf.mxu0
      %v1323 = vadd.f32 0.0, %v1322
      %1324 = vmatmul.bf16.gmra.mxu0 %v1019
      %v1325 = vpop.f32.mrf.mxu0
      %v1326 = vadd.f32 0.0, %v1325
      %v1327 = vpop.f32.mrf.mxu0
      %v1328 = vadd.f32 0.0, %v1327
      %1329 = vmatmul.bf16.gmra.mxu0 %v1281
      %v1330 = vpop.f32.mrf.mxu0
      %v1331 = vadd.f32 0.0, %v1330
      %v1332 = vpop.f32.mrf.mxu0
      %v1333 = vadd.f32 0.0, %v1332
      %1334 = vdwg.mxu0
      %v1335 = vadd.f32 %v1251, %v1296
      %v1336 = vadd.f32 %v1252, %v1298
      %v1337 = vadd.f32 %v1253, %v1301
      %v1338 = vadd.f32 %v1254, %v1303
      %v1339 = vadd.f32 %v1255, %v1306
      %v1340 = vadd.f32 %v1256, %v1308
      %v1341 = vadd.f32 %v1257, %v1311
      %v1342 = vadd.f32 %v1258, %v1313
      %v1343 = vadd.f32 %v1259, %v1316
      %v1344 = vadd.f32 %v1260, %v1318
      %v1345 = vadd.f32 %v1261, %v1321
      %v1346 = vadd.f32 %v1262, %v1323
      %v1347 = vadd.f32 %v1263, %v1326
      %v1348 = vadd.f32 %v1264, %v1328
      %v1349 = vadd.f32 %v1265, %v1331
      %v1350 = vadd.f32 %v1266, %v1333
      %v1351 = vld [vmem:[%s2] sm:$0x1]
      %v1352 = vld [vmem:[%s2 + $0x1] sm:$0x1]
      %v1353 = vperm.slane %v1351, 0
      %v1354 = vmul.f32 %v1335, %v1353
      %v1355 = vmul.f32 %v1336, %v1353
      %v1356 = vmul.f32 %v1337, %v1353
      %v1357 = vmul.f32 %v1338, %v1353
      %v1358 = vmul.f32 %v1339, %v1353
      %v1359 = vmul.f32 %v1340, %v1353
      %v1360 = vmul.f32 %v1341, %v1353
      %v1361 = vmul.f32 %v1342, %v1353
      %v1362 = vmul.f32 %v1343, %v1353
      %v1363 = vmul.f32 %v1344, %v1353
      %v1364 = vmul.f32 %v1345, %v1353
      %v1365 = vmul.f32 %v1346, %v1353
      %v1366 = vmul.f32 %v1347, %v1353
      %v1367 = vmul.f32 %v1348, %v1353
      %v1368 = vmul.f32 %v1349, %v1353
      %v1369 = vmul.f32 %v1350, %v1353
      %v1370 = vperm.slane %v1352, 0
      %v1371 = vadd.f32 %v1354, %v1370
      %v1372 = vadd.f32 %v1355, %v1370
      %v1373 = vadd.f32 %v1356, %v1370
      %v1374 = vadd.f32 %v1357, %v1370
      %v1375 = vadd.f32 %v1358, %v1370
      %v1376 = vadd.f32 %v1359, %v1370
      %v1377 = vadd.f32 %v1360, %v1370
      %v1378 = vadd.f32 %v1361, %v1370
      %v1379 = vadd.f32 %v1362, %v1370
      %v1380 = vadd.f32 %v1363, %v1370
      %v1381 = vadd.f32 %v1364, %v1370
      %v1382 = vadd.f32 %v1365, %v1370
      %v1383 = vadd.f32 %v1366, %v1370
      %v1384 = vadd.f32 %v1367, %v1370
      %v1385 = vadd.f32 %v1368, %v1370
      %v1386 = vadd.f32 %v1369, %v1370
      %v1387 = vmax.f32 %v1371, 0.0
      %v1388 = vmax.f32 %v1372, 0.0
      %v1389 = vmax.f32 %v1373, 0.0
      %v1390 = vmax.f32 %v1374, 0.0
      %v1391 = vmax.f32 %v1375, 0.0
      %v1392 = vmax.f32 %v1376, 0.0
      %v1393 = vmax.f32 %v1377, 0.0
      %v1394 = vmax.f32 %v1378, 0.0
      %v1395 = vmax.f32 %v1379, 0.0
      %v1396 = vmax.f32 %v1380, 0.0
      %v1397 = vmax.f32 %v1381, 0.0
      %v1398 = vmax.f32 %v1382, 0.0
      %v1399 = vmax.f32 %v1383, 0.0
      %v1400 = vmax.f32 %v1384, 0.0
      %v1401 = vmax.f32 %v1385, 0.0
      %v1402 = vmax.f32 %v1386, 0.0
      %1403 = vxpose.xlu0.b32.start [1/16] %v1387, 128
      %1404 = vxpose.xlu0.b32.cont [2/16] %v1388, 128
      %1405 = vxpose.xlu0.b32.cont [3/16] %v1389, 128
      %1406 = vxpose.xlu0.b32.cont [4/16] %v1390, 128
      %1407 = vxpose.xlu0.b32.cont [5/16] %v1391, 128
      %1408 = vxpose.xlu0.b32.cont [6/16] %v1392, 128
      %1409 = vxpose.xlu0.b32.cont [7/16] %v1393, 128
      %1410 = vxpose.xlu0.b32.cont [8/16] %v1394, 128
      %1411 = vxpose.xlu0.b32.cont [9/16] %v1395, 128
      %1412 = vxpose.xlu0.b32.cont [10/16] %v1396, 128
      %1413 = vxpose.xlu0.b32.cont [11/16] %v1397, 128
      %1414 = vxpose.xlu0.b32.cont [12/16] %v1398, 128
      %1415 = vxpose.xlu0.b32.cont [13/16] %v1399, 128
      %1416 = vxpose.xlu0.b32.cont [14/16] %v1400, 128
      %1417 = vxpose.xlu0.b32.cont [15/16] %v1401, 128
      %1418 = vxpose.xlu0.b32.end [16/16] %v1402, 128
      %v1419 = vpop.trf.xlu0
      %v1420 = vpop.trf.xlu0
      %v1421 = vpop.trf.xlu0
      %v1422 = vpop.trf.xlu0
      %v1423 = vpop.trf.xlu0
      %v1424 = vpop.trf.xlu0
      %v1425 = vpop.trf.xlu0
      %v1426 = vpop.trf.xlu0
      %v1427 = vpop.trf.xlu0
      %v1428 = vpop.trf.xlu0
      %v1429 = vpop.trf.xlu0
      %v1430 = vpop.trf.xlu0
      %v1431 = vpop.trf.xlu0
      %v1432 = vpop.trf.xlu0
      %v1433 = vpop.trf.xlu0
      %v1434 = vpop.trf.xlu0
      %1435 = vst [vmem:[%s190] sm:$0xff] %v1419
      %p1436 = scmp.lt.s32.totalorder %s18, 1
      %s1437 = scalar_select %p1436, %s18, 1
      %p1438 = scmp.lt.s32.totalorder %s19, 1
      %s1439 = scalar_select %p1438, %s19, 1
      %s1440 = smul.addr %s1437, 2
      %s1441 = sadd.s32 %s1439, %s1440
      %s1442 = smul.addr %s1441, 8
      %s1443 = scalar_lea.vmem %s3, %s1442
      // Predicated region
      $region33: #{forward.1} parent=31 // pred_check
        %p1444 = pneg %p114
      $region34: #{forward.1} parent=31 // pred_check_branch
        %1446 = sbr.rel (%p1444) target = $region36
      $region35: #{forward.1} parent=31 // pred_region
        _
      $region36: #{forward.1} parent=31 // pred_fallthru
        _
    $region32: #{forward.1} parent=5 // pred_fallthru
      _
    %p1447 = scmp.le.s32.totalorder 2, %s9
    // Predicated region
    $region37: #{forward.1} parent=5 // pred_check
      %p1448 = pneg %p1447
    $region38: #{forward.1} parent=5 // pred_check_branch
      %1450 = sbr.rel (%p1448) target = $region40
    $region39: #{forward.1} parent=5 // pred_region
      %s1451 = ssub.s32 %s9, 2
      // Predicated region
      $region41: #{forward.1} parent=39 // pred_check
        %p1452 = pneg %p120
      $region42: #{forward.1} parent=39 // pred_check_branch
        %1454 = sbr.rel (%p1452) target = $region44
      $region43: #{forward.1} parent=39 // pred_region
        %p1455 = scmp.lt.s32.totalorder %s20, 1
        %s1456 = scalar_select %p1455, %s20, 1
        %p1457 = scmp.lt.s32.totalorder %s21, 1
        %s1458 = scalar_select %p1457, %s21, 1
        %s1459 = smul.addr %s1456, 2
        %s1460 = sadd.s32 %s1458, %s1459
        %s1461 = smul.addr %s1460, 8
        %s1462 = scalar_lea.vmem %s3, %s1461
      $region44: #{forward.1} parent=39 // pred_fallthru
        _
    $region40: #{forward.1} parent=5 // pred_fallthru
      _
  $region6: #{forward.1} parent=0 // loop_footer
    %s13 = sadd.s32 1, %s9
  $region7: #{forward.1} parent=0 // loop_footer_branch
    %8 = sbr.rel target = $region3
  $region8: #{forward.1} parent=0 // loop_exit
    _

</llo_original>
